<compile_context>
chip_gen: v7x
topology: tpu7x:2x2x1
jax: 0.10.0
libtpu: 0.0.40
codegen_flags: <defaults>
</compile_context>

<pallas_src>
import numpy as np
import jax
import jax.numpy as jnp
from jax.experimental import pallas as pl
from jax.experimental.pallas import tpu as pltpu

# RobertaTokenizer('microsoft/codebert-base') special ids
BOS_TOKEN_ID = 0
PAD_TOKEN_ID = 1
EOS_TOKEN_ID = 2
MASK_TOKEN_ID = 50264

MAX_PRED = 20
SEQ_LEN = 128          # small stand-in for the tokenizer's max_length
TOK_OUT_LANES = 128    # lane-dense mlm_tokens output width (sliced to 20 outside)


def _mlm_kernel(ids_ref, pos_ref, npred_ref, out_ids_ref, mlm_tok_ref):
    """MLM gather/scatter for one [TB, S] batch tile.

    ids_ref     : [TB, S]    int32  token ids (with specials + padding)
    pos_ref     : [TB, P]    int32  candidate masked positions (0-padded)
    npred_ref   : [TB, 1]    int32  number of valid masked positions per row
    out_ids_ref : [TB, S]    int32  ids with <mask> scattered in
    mlm_tok_ref : [TB, 128]  int32  original ids at masked positions
                                    (columns >= P are zero padding)

    NOTE: correctness relies on mlm_pos being 0-padded beyond n_pred; the
    `j < n_pred` validity mask turns padded entries into -1 so they never
    match a sequence lane.  The PyTorch module samples positions without
    replacement, and duplicates would anyway be harmless (the scatter is an
    OR-accumulate and each candidate j matches exactly one lane).
    """
    ids = ids_ref[...]            # [TB, S]
    pos = pos_ref[...]            # [TB, P]
    npred = npred_ref[...]        # [TB, 1]
    TB, S = ids.shape
    P = pos.shape[1]
    P_OUT = mlm_tok_ref.shape[1]

    # Invalidate padded candidate slots once, on the tiny [TB, P] tile.
    p_iota = jax.lax.broadcasted_iota(jnp.int32, (TB, P), 1)         # [TB, P]
    pos_valid = jnp.where(p_iota < npred, pos, jnp.int32(-1))        # [TB, P]

    s_iota = jax.lax.broadcasted_iota(jnp.int32, (TB, S), 1)         # [TB, S]
    lane_iota = jax.lax.broadcasted_iota(jnp.int32, (TB, P_OUT), 1)  # [TB, 128]

    is_masked = jnp.zeros((TB, S), dtype=jnp.bool_)
    tok_out = jnp.zeros((TB, P_OUT), dtype=jnp.int32)

    # Static unroll over the (small, fixed) number of candidate positions.
    # Pure 2-D [TB, S] VPU work per step; one lane-reduce per step for the
    # gathered id.  No [TB, P, S] intermediates are ever materialized.
    for j in range(P):
        pos_j = pos_valid[:, j:j + 1]                                # [TB, 1]
        match_j = s_iota == pos_j                                    # [TB, S]
        is_masked = is_masked | match_j
        g_j = jnp.sum(jnp.where(match_j, ids, 0), axis=1,
                      keepdims=True)                                 # [TB, 1]
        tok_out = jnp.where(lane_iota == jnp.int32(j), g_j, tok_out)

    out_ids_ref[...] = jnp.where(is_masked, jnp.int32(MASK_TOKEN_ID), ids)
    mlm_tok_ref[...] = tok_out


def _round_up(x, m):
    return ((x + m - 1) // m) * m


def mlm_mask_pallas(input_ids, mlm_pos, n_pred, *, tb=None):
    """Run the MLM gather/scatter kernel over a batch grid.

    Returns (masked_ids [B, S], mlm_tokens [B, P]).
    """
    B, S = input_ids.shape
    P = mlm_pos.shape[1]

    if tb is None:
        # rows per grid step: multiple of 8, big enough to amortize the
        # ~0.35us per-step overhead, small enough that the double-buffered
        # block footprint stays a few MiB on all generations (incl. v7x's
        # 64 MiB VMEM).
        tb = min(1024, _round_up(B, 8))

    input_ids = input_ids.astype(jnp.int32)
    mlm_pos = mlm_pos.astype(jnp.int32)
    n_pred = n_pred.astype(jnp.int32)

    # Pad batch to a multiple of tb; padded rows have n_pred = 0 -> no-op.
    B_pad = _round_up(B, tb)
    if B_pad != B:
        pad = B_pad - B
        input_ids = jnp.concatenate(
            [input_ids, jnp.full((pad, S), PAD_TOKEN_ID, jnp.int32)], axis=0)
        mlm_pos = jnp.concatenate(
            [mlm_pos, jnp.zeros((pad, P), jnp.int32)], axis=0)
        n_pred = jnp.concatenate(
            [n_pred, jnp.zeros((pad,), jnp.int32)], axis=0)

    npred2 = n_pred.reshape(B_pad, 1)

    out_ids, mlm_tok = pl.pallas_call(
        _mlm_kernel,
        out_shape=(
            jax.ShapeDtypeStruct((B_pad, S), jnp.int32),
            jax.ShapeDtypeStruct((B_pad, TOK_OUT_LANES), jnp.int32),
        ),
        grid_spec=pltpu.PrefetchScalarGridSpec(
            num_scalar_prefetch=0,
            grid=(B_pad // tb,),
            in_specs=[
                pl.BlockSpec((tb, S), lambda i: (i, 0)),
                pl.BlockSpec((tb, P), lambda i: (i, 0)),
                pl.BlockSpec((tb, 1), lambda i: (i, 0)),
            ],
            out_specs=(
                pl.BlockSpec((tb, S), lambda i: (i, 0)),
                pl.BlockSpec((tb, TOK_OUT_LANES), lambda i: (i, 0)),
            ),
        ),
        compiler_params=pltpu.CompilerParams(
            dimension_semantics=("parallel",)),
    )(input_ids, mlm_pos, npred2)

    return out_ids[:B], mlm_tok[:B, :P]


def features_mlm_forward(input_ids, attention_mask, mlm_pos, n_pred, labels_int):
    """Tensor-side equivalent of features_MLM.forward.

    Returns (ids, masks, mlm_tokens, mlm_pos, labels_int) exactly like the
    PyTorch module (int32 instead of int64 on TPU).  mlm_pos is returned
    directly (it is already 0-padded beyond n_pred, so the kernel does not
    re-emit it).
    """
    out_ids, mlm_tokens = mlm_mask_pallas(input_ids, mlm_pos, n_pred)
    return out_ids, attention_mask, mlm_tokens, mlm_pos.astype(jnp.int32), labels_int


if __name__ == "__main__":
    # TODO(synk): file reading, comment stripping and RobertaTokenizer encoding
    # have no Pallas equivalent; deterministic synthetic token ids with the
    # same shapes / semantics are built here instead.
    key = jax.random.PRNGKey(0)
    k_ids, k_perm = jax.random.split(key)

    B = 2
    seq_lens = np.array([60, 90], dtype=np.int32)   # per-example token counts

    rand_ids = np.asarray(
        jax.random.randint(k_ids, (B, SEQ_LEN), 4, 1000), dtype=np.int32)

    input_ids = np.full((B, SEQ_LEN), PAD_TOKEN_ID, dtype=np.int32)
    attention_mask = np.zeros((B, SEQ_LEN), dtype=np.int32)
    mlm_pos = np.zeros((B, MAX_PRED), dtype=np.int32)
    n_pred = np.zeros((B,), dtype=np.int32)

    for b in range(B):
        L = int(seq_lens[b])
        input_ids[b, :L] = rand_ids[b, :L]
        input_ids[b, 0] = BOS_TOKEN_ID
        input_ids[b, L - 1] = EOS_TOKEN_ID
        attention_mask[b, :L] = 1

        n_code_tokens = L - 2   # tokens without special tokens
        npb = int(min(MAX_PRED, max(1, round(n_code_tokens * 0.15))))
        n_pred[b] = npb
        # deterministic stand-in for random.shuffle(cand_maked_pos); sampled
        # without replacement, matching the PyTorch module's contract.
        perm = np.asarray(
            jax.random.permutation(jax.random.fold_in(k_perm, b), n_code_tokens))
        mlm_pos[b, :npb] = perm[:npb] + 1   # positions inside input_ids
        assert len(set(mlm_pos[b, :npb].tolist())) == npb, "duplicate positions"

    labels = ["safe", "vulnerable"]
    labels_int = jnp.array([0 if l == "safe" else 1 for l in labels],
                           dtype=jnp.int32)

    ids_j = jnp.asarray(input_ids)
    mask_j = jnp.asarray(attention_mask)
    pos_j = jnp.asarray(mlm_pos)
    npred_j = jnp.asarray(n_pred)

    out = features_mlm_forward(ids_j, mask_j, pos_j, npred_j, labels_int)
    out = jax.block_until_ready(out)
    out_ids, out_mask, out_mlm_tok, out_mlm_pos, out_labels = [
        np.asarray(o) for o in out]

    # numpy reference of the torch masking loop
    ref_ids = input_ids.copy()
    ref_tok = np.zeros((B, MAX_PRED), dtype=np.int32)
    for b in range(B):
        for j in range(int(n_pred[b])):
            p = int(mlm_pos[b, j])
            ref_tok[b, j] = ref_ids[b, p]
            ref_ids[b, p] = MASK_TOKEN_ID

    assert np.array_equal(out_ids, ref_ids), "masked ids mismatch"
    assert np.array_equal(out_mlm_tok, ref_tok), "mlm_tokens mismatch"
    assert np.array_equal(out_mlm_pos, mlm_pos), "mlm_pos mismatch"
    assert np.array_equal(out_mask, attention_mask), "attention mask mismatch"
    assert np.array_equal(out_labels, np.array([0, 1], dtype=np.int32)), "labels mismatch"

    print("KERNEL_OK")
</pallas_src>

<mosaic_0001>
module attributes {stable_mosaic.version = 11 : i64} {
  func.func @_mlm_kernel(%arg0: i32, %arg1: memref<8x128xi32, #tpu.memory_space<vmem>>, %arg2: memref<8x20xi32, #tpu.memory_space<vmem>>, %arg3: memref<8x1xi32, #tpu.memory_space<vmem>>, %arg4: memref<8x128xi32, #tpu.memory_space<vmem>>, %arg5: memref<8x128xi32, #tpu.memory_space<vmem>>) attributes {dimension_semantics = [#tpu.dimension_semantics<parallel>], iteration_bounds = array<i64: 1>, scalar_prefetch = 0 : i64, scratch_operands = 0 : i64, tpu.core_type = #tpu.core_type<tc>, window_params = [{transform_indices = @transform_0, window_bounds = array<i64: 8, 128>}, {transform_indices = @transform_1, window_bounds = array<i64: 8, 20>}, {transform_indices = @transform_2, window_bounds = array<i64: 8, 1>}, {transform_indices = @transform_3, window_bounds = array<i64: 8, 128>}, {transform_indices = @transform_4, window_bounds = array<i64: 8, 128>}]} {
    %c0 = arith.constant 0 : index
    %c0_0 = arith.constant 0 : index
    %0 = vector.load %arg1[%c0, %c0_0] : memref<8x128xi32, #tpu.memory_space<vmem>>, vector<8x128xi32>
    %c0_1 = arith.constant 0 : index
    %c0_2 = arith.constant 0 : index
    %1 = vector.load %arg2[%c0_1, %c0_2] : memref<8x20xi32, #tpu.memory_space<vmem>>, vector<8x20xi32>
    %c0_3 = arith.constant 0 : index
    %c0_4 = arith.constant 0 : index
    %2 = vector.load %arg3[%c0_3, %c0_4] : memref<8x1xi32, #tpu.memory_space<vmem>>, vector<8x1xi32>
    %3 = tpu.iota {dimensions = array<i32: 1>} : vector<8x20xi32>
    %4 = vector.broadcast %2 : vector<8x1xi32> to vector<8x20xi32>
    %5 = arith.cmpi slt, %3, %4 : vector<8x20xi32>
    %c-1_i32 = arith.constant -1 : i32
    %6 = vector.broadcast %c-1_i32 : i32 to vector<8x20xi32>
    %7 = arith.select %5, %1, %6 : vector<8x20xi1>, vector<8x20xi32>
    %8 = tpu.iota {dimensions = array<i32: 1>} : vector<8x128xi32>
    %9 = tpu.iota {dimensions = array<i32: 1>} : vector<8x128xi32>
    %false = arith.constant false
    %10 = vector.broadcast %false : i1 to vector<8x128xi1>
    %c0_i32 = arith.constant 0 : i32
    %11 = vector.broadcast %c0_i32 : i32 to vector<8x128xi32>
    %12 = vector.extract_strided_slice %7 {offsets = [0, 0], sizes = [8, 1], strides = [1, 1]} : vector<8x20xi32> to vector<8x1xi32>
    %13 = vector.broadcast %12 : vector<8x1xi32> to vector<8x128xi32>
    %14 = arith.cmpi eq, %8, %13 : vector<8x128xi32>
    %15 = arith.ori %10, %14 : vector<8x128xi1>
    %c0_i32_5 = arith.constant 0 : i32
    %16 = vector.broadcast %c0_i32_5 : i32 to vector<8x128xi32>
    %17 = arith.select %14, %0, %16 : vector<8x128xi1>, vector<8x128xi32>
    %cst = arith.constant dense<0> : vector<8xi32>
    %18 = vector.multi_reduction <add>, %17, %cst [1] : vector<8x128xi32> to vector<8xi32>
    %19 = vector.shape_cast %18 : vector<8xi32> to vector<8x1xi32>
    %c0_i32_6 = arith.constant 0 : i32
    %20 = vector.broadcast %c0_i32_6 : i32 to vector<8x128xi32>
    %21 = arith.cmpi eq, %9, %20 : vector<8x128xi32>
    %22 = vector.shape_cast %19 : vector<8x1xi32> to vector<8x1xi32>
    %23 = vector.broadcast %22 : vector<8x1xi32> to vector<8x128xi32>
    %24 = arith.select %21, %23, %11 : vector<8x128xi1>, vector<8x128xi32>
    %25 = vector.extract_strided_slice %7 {offsets = [0, 1], sizes = [8, 1], strides = [1, 1]} : vector<8x20xi32> to vector<8x1xi32>
    %26 = vector.broadcast %25 : vector<8x1xi32> to vector<8x128xi32>
    %27 = arith.cmpi eq, %8, %26 : vector<8x128xi32>
    %28 = arith.ori %15, %27 : vector<8x128xi1>
    %c0_i32_7 = arith.constant 0 : i32
    %29 = vector.broadcast %c0_i32_7 : i32 to vector<8x128xi32>
    %30 = arith.select %27, %0, %29 : vector<8x128xi1>, vector<8x128xi32>
    %cst_8 = arith.constant dense<0> : vector<8xi32>
    %31 = vector.multi_reduction <add>, %30, %cst_8 [1] : vector<8x128xi32> to vector<8xi32>
    %32 = vector.shape_cast %31 : vector<8xi32> to vector<8x1xi32>
    %c1_i32 = arith.constant 1 : i32
    %33 = vector.broadcast %c1_i32 : i32 to vector<8x128xi32>
    %34 = arith.cmpi eq, %9, %33 : vector<8x128xi32>
    %35 = vector.shape_cast %32 : vector<8x1xi32> to vector<8x1xi32>
    %36 = vector.broadcast %35 : vector<8x1xi32> to vector<8x128xi32>
    %37 = arith.select %34, %36, %24 : vector<8x128xi1>, vector<8x128xi32>
    %38 = vector.extract_strided_slice %7 {offsets = [0, 2], sizes = [8, 1], strides = [1, 1]} : vector<8x20xi32> to vector<8x1xi32>
    %39 = vector.broadcast %38 : vector<8x1xi32> to vector<8x128xi32>
    %40 = arith.cmpi eq, %8, %39 : vector<8x128xi32>
    %41 = arith.ori %28, %40 : vector<8x128xi1>
    %c0_i32_9 = arith.constant 0 : i32
    %42 = vector.broadcast %c0_i32_9 : i32 to vector<8x128xi32>
    %43 = arith.select %40, %0, %42 : vector<8x128xi1>, vector<8x128xi32>
    %cst_10 = arith.constant dense<0> : vector<8xi32>
    %44 = vector.multi_reduction <add>, %43, %cst_10 [1] : vector<8x128xi32> to vector<8xi32>
    %45 = vector.shape_cast %44 : vector<8xi32> to vector<8x1xi32>
    %c2_i32 = arith.constant 2 : i32
    %46 = vector.broadcast %c2_i32 : i32 to vector<8x128xi32>
    %47 = arith.cmpi eq, %9, %46 : vector<8x128xi32>
    %48 = vector.shape_cast %45 : vector<8x1xi32> to vector<8x1xi32>
    %49 = vector.broadcast %48 : vector<8x1xi32> to vector<8x128xi32>
    %50 = arith.select %47, %49, %37 : vector<8x128xi1>, vector<8x128xi32>
    %51 = vector.extract_strided_slice %7 {offsets = [0, 3], sizes = [8, 1], strides = [1, 1]} : vector<8x20xi32> to vector<8x1xi32>
    %52 = vector.broadcast %51 : vector<8x1xi32> to vector<8x128xi32>
    %53 = arith.cmpi eq, %8, %52 : vector<8x128xi32>
    %54 = arith.ori %41, %53 : vector<8x128xi1>
    %c0_i32_11 = arith.constant 0 : i32
    %55 = vector.broadcast %c0_i32_11 : i32 to vector<8x128xi32>
    %56 = arith.select %53, %0, %55 : vector<8x128xi1>, vector<8x128xi32>
    %cst_12 = arith.constant dense<0> : vector<8xi32>
    %57 = vector.multi_reduction <add>, %56, %cst_12 [1] : vector<8x128xi32> to vector<8xi32>
    %58 = vector.shape_cast %57 : vector<8xi32> to vector<8x1xi32>
    %c3_i32 = arith.constant 3 : i32
    %59 = vector.broadcast %c3_i32 : i32 to vector<8x128xi32>
    %60 = arith.cmpi eq, %9, %59 : vector<8x128xi32>
    %61 = vector.shape_cast %58 : vector<8x1xi32> to vector<8x1xi32>
    %62 = vector.broadcast %61 : vector<8x1xi32> to vector<8x128xi32>
    %63 = arith.select %60, %62, %50 : vector<8x128xi1>, vector<8x128xi32>
    %64 = vector.extract_strided_slice %7 {offsets = [0, 4], sizes = [8, 1], strides = [1, 1]} : vector<8x20xi32> to vector<8x1xi32>
    %65 = vector.broadcast %64 : vector<8x1xi32> to vector<8x128xi32>
    %66 = arith.cmpi eq, %8, %65 : vector<8x128xi32>
    %67 = arith.ori %54, %66 : vector<8x128xi1>
    %c0_i32_13 = arith.constant 0 : i32
    %68 = vector.broadcast %c0_i32_13 : i32 to vector<8x128xi32>
    %69 = arith.select %66, %0, %68 : vector<8x128xi1>, vector<8x128xi32>
    %cst_14 = arith.constant dense<0> : vector<8xi32>
    %70 = vector.multi_reduction <add>, %69, %cst_14 [1] : vector<8x128xi32> to vector<8xi32>
    %71 = vector.shape_cast %70 : vector<8xi32> to vector<8x1xi32>
    %c4_i32 = arith.constant 4 : i32
    %72 = vector.broadcast %c4_i32 : i32 to vector<8x128xi32>
    %73 = arith.cmpi eq, %9, %72 : vector<8x128xi32>
    %74 = vector.shape_cast %71 : vector<8x1xi32> to vector<8x1xi32>
    %75 = vector.broadcast %74 : vector<8x1xi32> to vector<8x128xi32>
    %76 = arith.select %73, %75, %63 : vector<8x128xi1>, vector<8x128xi32>
    %77 = vector.extract_strided_slice %7 {offsets = [0, 5], sizes = [8, 1], strides = [1, 1]} : vector<8x20xi32> to vector<8x1xi32>
    %78 = vector.broadcast %77 : vector<8x1xi32> to vector<8x128xi32>
    %79 = arith.cmpi eq, %8, %78 : vector<8x128xi32>
    %80 = arith.ori %67, %79 : vector<8x128xi1>
    %c0_i32_15 = arith.constant 0 : i32
    %81 = vector.broadcast %c0_i32_15 : i32 to vector<8x128xi32>
    %82 = arith.select %79, %0, %81 : vector<8x128xi1>, vector<8x128xi32>
    %cst_16 = arith.constant dense<0> : vector<8xi32>
    %83 = vector.multi_reduction <add>, %82, %cst_16 [1] : vector<8x128xi32> to vector<8xi32>
    %84 = vector.shape_cast %83 : vector<8xi32> to vector<8x1xi32>
    %c5_i32 = arith.constant 5 : i32
    %85 = vector.broadcast %c5_i32 : i32 to vector<8x128xi32>
    %86 = arith.cmpi eq, %9, %85 : vector<8x128xi32>
    %87 = vector.shape_cast %84 : vector<8x1xi32> to vector<8x1xi32>
    %88 = vector.broadcast %87 : vector<8x1xi32> to vector<8x128xi32>
    %89 = arith.select %86, %88, %76 : vector<8x128xi1>, vector<8x128xi32>
    %90 = vector.extract_strided_slice %7 {offsets = [0, 6], sizes = [8, 1], strides = [1, 1]} : vector<8x20xi32> to vector<8x1xi32>
    %91 = vector.broadcast %90 : vector<8x1xi32> to vector<8x128xi32>
    %92 = arith.cmpi eq, %8, %91 : vector<8x128xi32>
    %93 = arith.ori %80, %92 : vector<8x128xi1>
    %c0_i32_17 = arith.constant 0 : i32
    %94 = vector.broadcast %c0_i32_17 : i32 to vector<8x128xi32>
    %95 = arith.select %92, %0, %94 : vector<8x128xi1>, vector<8x128xi32>
    %cst_18 = arith.constant dense<0> : vector<8xi32>
    %96 = vector.multi_reduction <add>, %95, %cst_18 [1] : vector<8x128xi32> to vector<8xi32>
    %97 = vector.shape_cast %96 : vector<8xi32> to vector<8x1xi32>
    %c6_i32 = arith.constant 6 : i32
    %98 = vector.broadcast %c6_i32 : i32 to vector<8x128xi32>
    %99 = arith.cmpi eq, %9, %98 : vector<8x128xi32>
    %100 = vector.shape_cast %97 : vector<8x1xi32> to vector<8x1xi32>
    %101 = vector.broadcast %100 : vector<8x1xi32> to vector<8x128xi32>
    %102 = arith.select %99, %101, %89 : vector<8x128xi1>, vector<8x128xi32>
    %103 = vector.extract_strided_slice %7 {offsets = [0, 7], sizes = [8, 1], strides = [1, 1]} : vector<8x20xi32> to vector<8x1xi32>
    %104 = vector.broadcast %103 : vector<8x1xi32> to vector<8x128xi32>
    %105 = arith.cmpi eq, %8, %104 : vector<8x128xi32>
    %106 = arith.ori %93, %105 : vector<8x128xi1>
    %c0_i32_19 = arith.constant 0 : i32
    %107 = vector.broadcast %c0_i32_19 : i32 to vector<8x128xi32>
    %108 = arith.select %105, %0, %107 : vector<8x128xi1>, vector<8x128xi32>
    %cst_20 = arith.constant dense<0> : vector<8xi32>
    %109 = vector.multi_reduction <add>, %108, %cst_20 [1] : vector<8x128xi32> to vector<8xi32>
    %110 = vector.shape_cast %109 : vector<8xi32> to vector<8x1xi32>
    %c7_i32 = arith.constant 7 : i32
    %111 = vector.broadcast %c7_i32 : i32 to vector<8x128xi32>
    %112 = arith.cmpi eq, %9, %111 : vector<8x128xi32>
    %113 = vector.shape_cast %110 : vector<8x1xi32> to vector<8x1xi32>
    %114 = vector.broadcast %113 : vector<8x1xi32> to vector<8x128xi32>
    %115 = arith.select %112, %114, %102 : vector<8x128xi1>, vector<8x128xi32>
    %116 = vector.extract_strided_slice %7 {offsets = [0, 8], sizes = [8, 1], strides = [1, 1]} : vector<8x20xi32> to vector<8x1xi32>
    %117 = vector.broadcast %116 : vector<8x1xi32> to vector<8x128xi32>
    %118 = arith.cmpi eq, %8, %117 : vector<8x128xi32>
    %119 = arith.ori %106, %118 : vector<8x128xi1>
    %c0_i32_21 = arith.constant 0 : i32
    %120 = vector.broadcast %c0_i32_21 : i32 to vector<8x128xi32>
    %121 = arith.select %118, %0, %120 : vector<8x128xi1>, vector<8x128xi32>
    %cst_22 = arith.constant dense<0> : vector<8xi32>
    %122 = vector.multi_reduction <add>, %121, %cst_22 [1] : vector<8x128xi32> to vector<8xi32>
    %123 = vector.shape_cast %122 : vector<8xi32> to vector<8x1xi32>
    %c8_i32 = arith.constant 8 : i32
    %124 = vector.broadcast %c8_i32 : i32 to vector<8x128xi32>
    %125 = arith.cmpi eq, %9, %124 : vector<8x128xi32>
    %126 = vector.shape_cast %123 : vector<8x1xi32> to vector<8x1xi32>
    %127 = vector.broadcast %126 : vector<8x1xi32> to vector<8x128xi32>
    %128 = arith.select %125, %127, %115 : vector<8x128xi1>, vector<8x128xi32>
    %129 = vector.extract_strided_slice %7 {offsets = [0, 9], sizes = [8, 1], strides = [1, 1]} : vector<8x20xi32> to vector<8x1xi32>
    %130 = vector.broadcast %129 : vector<8x1xi32> to vector<8x128xi32>
    %131 = arith.cmpi eq, %8, %130 : vector<8x128xi32>
    %132 = arith.ori %119, %131 : vector<8x128xi1>
    %c0_i32_23 = arith.constant 0 : i32
    %133 = vector.broadcast %c0_i32_23 : i32 to vector<8x128xi32>
    %134 = arith.select %131, %0, %133 : vector<8x128xi1>, vector<8x128xi32>
    %cst_24 = arith.constant dense<0> : vector<8xi32>
    %135 = vector.multi_reduction <add>, %134, %cst_24 [1] : vector<8x128xi32> to vector<8xi32>
    %136 = vector.shape_cast %135 : vector<8xi32> to vector<8x1xi32>
    %c9_i32 = arith.constant 9 : i32
    %137 = vector.broadcast %c9_i32 : i32 to vector<8x128xi32>
    %138 = arith.cmpi eq, %9, %137 : vector<8x128xi32>
    %139 = vector.shape_cast %136 : vector<8x1xi32> to vector<8x1xi32>
    %140 = vector.broadcast %139 : vector<8x1xi32> to vector<8x128xi32>
    %141 = arith.select %138, %140, %128 : vector<8x128xi1>, vector<8x128xi32>
    %142 = vector.extract_strided_slice %7 {offsets = [0, 10], sizes = [8, 1], strides = [1, 1]} : vector<8x20xi32> to vector<8x1xi32>
    %143 = vector.broadcast %142 : vector<8x1xi32> to vector<8x128xi32>
    %144 = arith.cmpi eq, %8, %143 : vector<8x128xi32>
    %145 = arith.ori %132, %144 : vector<8x128xi1>
    %c0_i32_25 = arith.constant 0 : i32
    %146 = vector.broadcast %c0_i32_25 : i32 to vector<8x128xi32>
    %147 = arith.select %144, %0, %146 : vector<8x128xi1>, vector<8x128xi32>
    %cst_26 = arith.constant dense<0> : vector<8xi32>
    %148 = vector.multi_reduction <add>, %147, %cst_26 [1] : vector<8x128xi32> to vector<8xi32>
    %149 = vector.shape_cast %148 : vector<8xi32> to vector<8x1xi32>
    %c10_i32 = arith.constant 10 : i32
    %150 = vector.broadcast %c10_i32 : i32 to vector<8x128xi32>
    %151 = arith.cmpi eq, %9, %150 : vector<8x128xi32>
    %152 = vector.shape_cast %149 : vector<8x1xi32> to vector<8x1xi32>
    %153 = vector.broadcast %152 : vector<8x1xi32> to vector<8x128xi32>
    %154 = arith.select %151, %153, %141 : vector<8x128xi1>, vector<8x128xi32>
    %155 = vector.extract_strided_slice %7 {offsets = [0, 11], sizes = [8, 1], strides = [1, 1]} : vector<8x20xi32> to vector<8x1xi32>
    %156 = vector.broadcast %155 : vector<8x1xi32> to vector<8x128xi32>
    %157 = arith.cmpi eq, %8, %156 : vector<8x128xi32>
    %158 = arith.ori %145, %157 : vector<8x128xi1>
    %c0_i32_27 = arith.constant 0 : i32
    %159 = vector.broadcast %c0_i32_27 : i32 to vector<8x128xi32>
    %160 = arith.select %157, %0, %159 : vector<8x128xi1>, vector<8x128xi32>
    %cst_28 = arith.constant dense<0> : vector<8xi32>
    %161 = vector.multi_reduction <add>, %160, %cst_28 [1] : vector<8x128xi32> to vector<8xi32>
    %162 = vector.shape_cast %161 : vector<8xi32> to vector<8x1xi32>
    %c11_i32 = arith.constant 11 : i32
    %163 = vector.broadcast %c11_i32 : i32 to vector<8x128xi32>
    %164 = arith.cmpi eq, %9, %163 : vector<8x128xi32>
    %165 = vector.shape_cast %162 : vector<8x1xi32> to vector<8x1xi32>
    %166 = vector.broadcast %165 : vector<8x1xi32> to vector<8x128xi32>
    %167 = arith.select %164, %166, %154 : vector<8x128xi1>, vector<8x128xi32>
    %168 = vector.extract_strided_slice %7 {offsets = [0, 12], sizes = [8, 1], strides = [1, 1]} : vector<8x20xi32> to vector<8x1xi32>
    %169 = vector.broadcast %168 : vector<8x1xi32> to vector<8x128xi32>
    %170 = arith.cmpi eq, %8, %169 : vector<8x128xi32>
    %171 = arith.ori %158, %170 : vector<8x128xi1>
    %c0_i32_29 = arith.constant 0 : i32
    %172 = vector.broadcast %c0_i32_29 : i32 to vector<8x128xi32>
    %173 = arith.select %170, %0, %172 : vector<8x128xi1>, vector<8x128xi32>
    %cst_30 = arith.constant dense<0> : vector<8xi32>
    %174 = vector.multi_reduction <add>, %173, %cst_30 [1] : vector<8x128xi32> to vector<8xi32>
    %175 = vector.shape_cast %174 : vector<8xi32> to vector<8x1xi32>
    %c12_i32 = arith.constant 12 : i32
    %176 = vector.broadcast %c12_i32 : i32 to vector<8x128xi32>
    %177 = arith.cmpi eq, %9, %176 : vector<8x128xi32>
    %178 = vector.shape_cast %175 : vector<8x1xi32> to vector<8x1xi32>
    %179 = vector.broadcast %178 : vector<8x1xi32> to vector<8x128xi32>
    %180 = arith.select %177, %179, %167 : vector<8x128xi1>, vector<8x128xi32>
    %181 = vector.extract_strided_slice %7 {offsets = [0, 13], sizes = [8, 1], strides = [1, 1]} : vector<8x20xi32> to vector<8x1xi32>
    %182 = vector.broadcast %181 : vector<8x1xi32> to vector<8x128xi32>
    %183 = arith.cmpi eq, %8, %182 : vector<8x128xi32>
    %184 = arith.ori %171, %183 : vector<8x128xi1>
    %c0_i32_31 = arith.constant 0 : i32
    %185 = vector.broadcast %c0_i32_31 : i32 to vector<8x128xi32>
    %186 = arith.select %183, %0, %185 : vector<8x128xi1>, vector<8x128xi32>
    %cst_32 = arith.constant dense<0> : vector<8xi32>
    %187 = vector.multi_reduction <add>, %186, %cst_32 [1] : vector<8x128xi32> to vector<8xi32>
    %188 = vector.shape_cast %187 : vector<8xi32> to vector<8x1xi32>
    %c13_i32 = arith.constant 13 : i32
    %189 = vector.broadcast %c13_i32 : i32 to vector<8x128xi32>
    %190 = arith.cmpi eq, %9, %189 : vector<8x128xi32>
    %191 = vector.shape_cast %188 : vector<8x1xi32> to vector<8x1xi32>
    %192 = vector.broadcast %191 : vector<8x1xi32> to vector<8x128xi32>
    %193 = arith.select %190, %192, %180 : vector<8x128xi1>, vector<8x128xi32>
    %194 = vector.extract_strided_slice %7 {offsets = [0, 14], sizes = [8, 1], strides = [1, 1]} : vector<8x20xi32> to vector<8x1xi32>
    %195 = vector.broadcast %194 : vector<8x1xi32> to vector<8x128xi32>
    %196 = arith.cmpi eq, %8, %195 : vector<8x128xi32>
    %197 = arith.ori %184, %196 : vector<8x128xi1>
    %c0_i32_33 = arith.constant 0 : i32
    %198 = vector.broadcast %c0_i32_33 : i32 to vector<8x128xi32>
    %199 = arith.select %196, %0, %198 : vector<8x128xi1>, vector<8x128xi32>
    %cst_34 = arith.constant dense<0> : vector<8xi32>
    %200 = vector.multi_reduction <add>, %199, %cst_34 [1] : vector<8x128xi32> to vector<8xi32>
    %201 = vector.shape_cast %200 : vector<8xi32> to vector<8x1xi32>
    %c14_i32 = arith.constant 14 : i32
    %202 = vector.broadcast %c14_i32 : i32 to vector<8x128xi32>
    %203 = arith.cmpi eq, %9, %202 : vector<8x128xi32>
    %204 = vector.shape_cast %201 : vector<8x1xi32> to vector<8x1xi32>
    %205 = vector.broadcast %204 : vector<8x1xi32> to vector<8x128xi32>
    %206 = arith.select %203, %205, %193 : vector<8x128xi1>, vector<8x128xi32>
    %207 = vector.extract_strided_slice %7 {offsets = [0, 15], sizes = [8, 1], strides = [1, 1]} : vector<8x20xi32> to vector<8x1xi32>
    %208 = vector.broadcast %207 : vector<8x1xi32> to vector<8x128xi32>
    %209 = arith.cmpi eq, %8, %208 : vector<8x128xi32>
    %210 = arith.ori %197, %209 : vector<8x128xi1>
    %c0_i32_35 = arith.constant 0 : i32
    %211 = vector.broadcast %c0_i32_35 : i32 to vector<8x128xi32>
    %212 = arith.select %209, %0, %211 : vector<8x128xi1>, vector<8x128xi32>
    %cst_36 = arith.constant dense<0> : vector<8xi32>
    %213 = vector.multi_reduction <add>, %212, %cst_36 [1] : vector<8x128xi32> to vector<8xi32>
    %214 = vector.shape_cast %213 : vector<8xi32> to vector<8x1xi32>
    %c15_i32 = arith.constant 15 : i32
    %215 = vector.broadcast %c15_i32 : i32 to vector<8x128xi32>
    %216 = arith.cmpi eq, %9, %215 : vector<8x128xi32>
    %217 = vector.shape_cast %214 : vector<8x1xi32> to vector<8x1xi32>
    %218 = vector.broadcast %217 : vector<8x1xi32> to vector<8x128xi32>
    %219 = arith.select %216, %218, %206 : vector<8x128xi1>, vector<8x128xi32>
    %220 = vector.extract_strided_slice %7 {offsets = [0, 16], sizes = [8, 1], strides = [1, 1]} : vector<8x20xi32> to vector<8x1xi32>
    %221 = vector.broadcast %220 : vector<8x1xi32> to vector<8x128xi32>
    %222 = arith.cmpi eq, %8, %221 : vector<8x128xi32>
    %223 = arith.ori %210, %222 : vector<8x128xi1>
    %c0_i32_37 = arith.constant 0 : i32
    %224 = vector.broadcast %c0_i32_37 : i32 to vector<8x128xi32>
    %225 = arith.select %222, %0, %224 : vector<8x128xi1>, vector<8x128xi32>
    %cst_38 = arith.constant dense<0> : vector<8xi32>
    %226 = vector.multi_reduction <add>, %225, %cst_38 [1] : vector<8x128xi32> to vector<8xi32>
    %227 = vector.shape_cast %226 : vector<8xi32> to vector<8x1xi32>
    %c16_i32 = arith.constant 16 : i32
    %228 = vector.broadcast %c16_i32 : i32 to vector<8x128xi32>
    %229 = arith.cmpi eq, %9, %228 : vector<8x128xi32>
    %230 = vector.shape_cast %227 : vector<8x1xi32> to vector<8x1xi32>
    %231 = vector.broadcast %230 : vector<8x1xi32> to vector<8x128xi32>
    %232 = arith.select %229, %231, %219 : vector<8x128xi1>, vector<8x128xi32>
    %233 = vector.extract_strided_slice %7 {offsets = [0, 17], sizes = [8, 1], strides = [1, 1]} : vector<8x20xi32> to vector<8x1xi32>
    %234 = vector.broadcast %233 : vector<8x1xi32> to vector<8x128xi32>
    %235 = arith.cmpi eq, %8, %234 : vector<8x128xi32>
    %236 = arith.ori %223, %235 : vector<8x128xi1>
    %c0_i32_39 = arith.constant 0 : i32
    %237 = vector.broadcast %c0_i32_39 : i32 to vector<8x128xi32>
    %238 = arith.select %235, %0, %237 : vector<8x128xi1>, vector<8x128xi32>
    %cst_40 = arith.constant dense<0> : vector<8xi32>
    %239 = vector.multi_reduction <add>, %238, %cst_40 [1] : vector<8x128xi32> to vector<8xi32>
    %240 = vector.shape_cast %239 : vector<8xi32> to vector<8x1xi32>
    %c17_i32 = arith.constant 17 : i32
    %241 = vector.broadcast %c17_i32 : i32 to vector<8x128xi32>
    %242 = arith.cmpi eq, %9, %241 : vector<8x128xi32>
    %243 = vector.shape_cast %240 : vector<8x1xi32> to vector<8x1xi32>
    %244 = vector.broadcast %243 : vector<8x1xi32> to vector<8x128xi32>
    %245 = arith.select %242, %244, %232 : vector<8x128xi1>, vector<8x128xi32>
    %246 = vector.extract_strided_slice %7 {offsets = [0, 18], sizes = [8, 1], strides = [1, 1]} : vector<8x20xi32> to vector<8x1xi32>
    %247 = vector.broadcast %246 : vector<8x1xi32> to vector<8x128xi32>
    %248 = arith.cmpi eq, %8, %247 : vector<8x128xi32>
    %249 = arith.ori %236, %248 : vector<8x128xi1>
    %c0_i32_41 = arith.constant 0 : i32
    %250 = vector.broadcast %c0_i32_41 : i32 to vector<8x128xi32>
    %251 = arith.select %248, %0, %250 : vector<8x128xi1>, vector<8x128xi32>
    %cst_42 = arith.constant dense<0> : vector<8xi32>
    %252 = vector.multi_reduction <add>, %251, %cst_42 [1] : vector<8x128xi32> to vector<8xi32>
    %253 = vector.shape_cast %252 : vector<8xi32> to vector<8x1xi32>
    %c18_i32 = arith.constant 18 : i32
    %254 = vector.broadcast %c18_i32 : i32 to vector<8x128xi32>
    %255 = arith.cmpi eq, %9, %254 : vector<8x128xi32>
    %256 = vector.shape_cast %253 : vector<8x1xi32> to vector<8x1xi32>
    %257 = vector.broadcast %256 : vector<8x1xi32> to vector<8x128xi32>
    %258 = arith.select %255, %257, %245 : vector<8x128xi1>, vector<8x128xi32>
    %259 = vector.extract_strided_slice %7 {offsets = [0, 19], sizes = [8, 1], strides = [1, 1]} : vector<8x20xi32> to vector<8x1xi32>
    %260 = vector.broadcast %259 : vector<8x1xi32> to vector<8x128xi32>
    %261 = arith.cmpi eq, %8, %260 : vector<8x128xi32>
    %262 = arith.ori %249, %261 : vector<8x128xi1>
    %c0_i32_43 = arith.constant 0 : i32
    %263 = vector.broadcast %c0_i32_43 : i32 to vector<8x128xi32>
    %264 = arith.select %261, %0, %263 : vector<8x128xi1>, vector<8x128xi32>
    %cst_44 = arith.constant dense<0> : vector<8xi32>
    %265 = vector.multi_reduction <add>, %264, %cst_44 [1] : vector<8x128xi32> to vector<8xi32>
    %266 = vector.shape_cast %265 : vector<8xi32> to vector<8x1xi32>
    %c19_i32 = arith.constant 19 : i32
    %267 = vector.broadcast %c19_i32 : i32 to vector<8x128xi32>
    %268 = arith.cmpi eq, %9, %267 : vector<8x128xi32>
    %269 = vector.shape_cast %266 : vector<8x1xi32> to vector<8x1xi32>
    %270 = vector.broadcast %269 : vector<8x1xi32> to vector<8x128xi32>
    %271 = arith.select %268, %270, %258 : vector<8x128xi1>, vector<8x128xi32>
    %c50264_i32 = arith.constant 50264 : i32
    %272 = vector.broadcast %c50264_i32 : i32 to vector<8x128xi32>
    %273 = arith.select %262, %272, %0 : vector<8x128xi1>, vector<8x128xi32>
    %c0_45 = arith.constant 0 : index
    %c0_46 = arith.constant 0 : index
    %274 = vector.load %arg4[%c0_45, %c0_46] : memref<8x128xi32, #tpu.memory_space<vmem>>, vector<8x128xi32>
    tpu.vector_store %arg4[%c0_45, %c0_46], %273 {strides = array<i32>} : memref<8x128xi32, #tpu.memory_space<vmem>>, vector<8x128xi32>,
    %c0_47 = arith.constant 0 : index
    %c0_48 = arith.constant 0 : index
    %275 = vector.load %arg5[%c0_47, %c0_48] : memref<8x128xi32, #tpu.memory_space<vmem>>, vector<8x128xi32>
    tpu.vector_store %arg5[%c0_47, %c0_48], %271 {strides = array<i32>} : memref<8x128xi32, #tpu.memory_space<vmem>>, vector<8x128xi32>,
    return
  }
  func.func @transform_0(%arg0: i32) -> (i32, i32) {
    %c0_i32 = arith.constant 0 : i32
    %c0_i32_0 = arith.constant 0 : i32
    return %arg0, %c0_i32 : i32, i32
  }
  func.func @transform_1(%arg0: i32) -> (i32, i32) {
    %c0_i32 = arith.constant 0 : i32
    %c0_i32_0 = arith.constant 0 : i32
    return %arg0, %c0_i32 : i32, i32
  }
  func.func @transform_2(%arg0: i32) -> (i32, i32) {
    %c0_i32 = arith.constant 0 : i32
    %c0_i32_0 = arith.constant 0 : i32
    return %arg0, %c0_i32 : i32, i32
  }
  func.func @transform_3(%arg0: i32) -> (i32, i32) {
    %c0_i32 = arith.constant 0 : i32
    %c0_i32_0 = arith.constant 0 : i32
    return %arg0, %c0_i32 : i32, i32
  }
  func.func @transform_4(%arg0: i32) -> (i32, i32) {
    %c0_i32 = arith.constant 0 : i32
    %c0_i32_0 = arith.constant 0 : i32
    return %arg0, %c0_i32 : i32, i32
  }
}

</mosaic_0001>

<llo_original>
// kernel: tpu_custom_call.1
$region0: #{tpu_custom_call.1}
  #allocation0 [shape = 'u32[]', space=smem, size = 0x4, offset = 0x4, fixed_abs, tag = 'smem constant byte address 0x4 - core index']
  #allocation1 [shape = 'u32[144,128]{1,0:T(1,128)}', space=vmem, size = 0x12000, scoped, tag = 'internal scratch']
  %s0 = inlined_call_operand.vmem [shape: s32[8,128], index: 0, kind: input, shape index: {}]
  %s1 = inlined_call_operand.hbm [shape: s32[8,20], index: 1, kind: input, shape index: {}]
  %s2 = inlined_call_operand.vmem [shape: s32[8,1], index: 2, kind: input, shape index: {}]
  %s3 = inlined_call_operand.hbm [shape: s32[8,128], index: 3, kind: output, shape index: {0}]
  %s4 = inlined_call_operand.hbm [shape: s32[8,128], index: 4, kind: output, shape index: {1}]
  %5 = xla_tuple %s3, %s4
  %s6 = sld [smem:[#allocation0]]
  $region34: #{tpu_custom_call.1} parent=0
    _
  %s8 = ssub.s32 1, %s6
  %s9 = scalar_select 0, %s8, %s6
  $region1: #{tpu_custom_call.1} parent=0
    #allocation2 [shape = 'u8[4096]{0}', space=vmem, size = 0x1000, scoped, tag = 'input window, operand 1, single buffered']
    #allocation3 [shape = 's32[1]{0}', space=sflag, size = 0x4, scoped, tag = 'scoped memory for tpu_custom_call.1']
    #allocation4 [shape = 's32[1]{0}', space=sflag, size = 0x4, scoped, tag = 'scoped memory for tpu_custom_call.1']
    #allocation5 [shape = 'u8[4096]{0}', space=vmem, size = 0x1000, scoped, tag = 'output window, operand 0, single buffered']
    #allocation6 [shape = 'u8[4096]{0}', space=vmem, size = 0x1000, scoped, tag = 'output window, operand 1, single buffered']
    #allocation7 [shape = 's32[1]{0}', space=sflag, size = 0x4, scoped, tag = 'scoped memory for tpu_custom_call.1']
    %10 = vsyncpa [#allocation3], 0
    %11 = vsyncpa [#allocation4], 0
    %12 = vsyncpa [#allocation7], 0
    // Predicated region
    $region2: #{tpu_custom_call.1} parent=1 // pred_check
      _
    $region3: #{tpu_custom_call.1} parent=1 // pred_check_branch
      %14 = sbr.rel (0) target = $region5
    $region4: #{tpu_custom_call.1} parent=1 // pred_region
      _
    $region5: #{tpu_custom_call.1} parent=1 // pred_fallthru
      _
    // Predicated region
    $region6: #{tpu_custom_call.1} parent=1 // pred_check
      _
    $region7: #{tpu_custom_call.1} parent=1 // pred_check_branch
      %16 = sbr.rel (0) target = $region9
    $region8: #{tpu_custom_call.1} parent=1 // pred_region
      %s18 = ssub.s32 128, 128
      %19 = vsyncadd [#allocation3], %s18
      %s21 = sshll.u32 [#allocation2], 4
      %s22 = int_to_ptr.vmem [resolvable:$true] %s21
      %24 = dma.hbm_to_vmem [thread:$0]  %s1, 128, %s22, [#allocation3]
    $region9: #{tpu_custom_call.1} parent=1 // pred_fallthru
      _
    // Predicated region
    $region10: #{tpu_custom_call.1} parent=1 // pred_check
      _
    $region11: #{tpu_custom_call.1} parent=1 // pred_check_branch
      %26 = sbr.rel (0) target = $region13
    $region12: #{tpu_custom_call.1} parent=1 // pred_region
      _
    $region13: #{tpu_custom_call.1} parent=1 // pred_fallthru
      _
    // Predicated region
    $region14: #{tpu_custom_call.1} parent=1 // pred_check
      _
    $region15: #{tpu_custom_call.1} parent=1 // pred_check_branch
      %28 = sbr.rel (0) target = $region17
    $region16: #{tpu_custom_call.1} parent=1 // pred_region
      %29 = dma.done [#allocation3], 128
    $region17: #{tpu_custom_call.1} parent=1 // pred_fallthru
      _
    %v30 = vld [vmem:[%s0] sm:$0xff]
    %v31 = vld [vmem:[#allocation2] sm:$0xff]
    %v32 = vld [vmem:[%s2] sm:$0xff]
    %v33 = vlaneseq
    %v34 = vand.u32 %v33, 127
    %35 = vset.pattern.permute.xlu0 0
    %36 = vperm.xlu0 %35, %v32
    %v37 = vpop.permute.xlu0 %36
    %vm38 = vcmp.lt.s32.totalorder %v34, %v37
    %v39 = vsel %vm38, %v31, 4294967295
    %40 = vset.pattern.permute.xlu0 0
    %41 = vperm.xlu0 %40, %v39
    %v42 = vpop.permute.xlu0 %41
    %vm43 = vcmp.eq.s32.totalorder %v34, %v42
    %v44 = vsel %vm43, %v30, 0
    %v45 = vand.u32 %v44, 65535
    %v46 = vshrl.u32 %v44, 16
    %v47 = vcvt.s32.f32 %v45
    %v48 = vcvt.s32.f32 %v46
    %49 = vadd.xlane.f32.xlu0 %v47
    %v50 = vpop.xlane.xlu0 %49
    %51 = vadd.xlane.f32.xlu0 %v48
    %v52 = vpop.xlane.xlu0 %51
    %v53 = vcvt.f32.s32 %v50
    %v54 = vcvt.f32.s32 %v52
    %v55 = vshll.u32 %v54, 16
    %v56 = vadd.s32 %v55, %v53
    %vm57 = vcmp.eq.s32.totalorder %v34, 0
    %v58 = vsel %vm57, %v56, 0
    %59 = vset.pattern.permute.xlu0 1
    %60 = vperm.xlu0 %59, %v39
    %v61 = vpop.permute.xlu0 %60
    %vm62 = vcmp.eq.s32.totalorder %v34, %v61
    %vm63 = vmor %vm43, %vm62
    %v64 = vsel %vm62, %v30, 0
    %v65 = vand.u32 %v64, 65535
    %v66 = vshrl.u32 %v64, 16
    %v67 = vcvt.s32.f32 %v65
    %v68 = vcvt.s32.f32 %v66
    %69 = vadd.xlane.f32.xlu0 %v67
    %v70 = vpop.xlane.xlu0 %69
    %71 = vadd.xlane.f32.xlu0 %v68
    %v72 = vpop.xlane.xlu0 %71
    %v73 = vcvt.f32.s32 %v70
    %v74 = vcvt.f32.s32 %v72
    %v75 = vshll.u32 %v74, 16
    %v76 = vadd.s32 %v75, %v73
    %vm77 = vcmp.eq.s32.totalorder %v34, 1
    %v78 = vsel %vm77, %v76, %v58
    %79 = vset.pattern.permute.xlu0 2
    %80 = vperm.xlu0 %79, %v39
    %v81 = vpop.permute.xlu0 %80
    %vm82 = vcmp.eq.s32.totalorder %v34, %v81
    %vm83 = vmor %vm63, %vm82
    %v84 = vsel %vm82, %v30, 0
    %v85 = vand.u32 %v84, 65535
    %v86 = vshrl.u32 %v84, 16
    %v87 = vcvt.s32.f32 %v85
    %v88 = vcvt.s32.f32 %v86
    %89 = vadd.xlane.f32.xlu0 %v87
    %v90 = vpop.xlane.xlu0 %89
    %91 = vadd.xlane.f32.xlu0 %v88
    %v92 = vpop.xlane.xlu0 %91
    %v93 = vcvt.f32.s32 %v90
    %v94 = vcvt.f32.s32 %v92
    %v95 = vshll.u32 %v94, 16
    %v96 = vadd.s32 %v95, %v93
    %vm97 = vcmp.eq.s32.totalorder %v34, 2
    %v98 = vsel %vm97, %v96, %v78
    %99 = vset.pattern.permute.xlu0 3
    %100 = vperm.xlu0 %99, %v39
    %v101 = vpop.permute.xlu0 %100
    %vm102 = vcmp.eq.s32.totalorder %v34, %v101
    %vm103 = vmor %vm83, %vm102
    %v104 = vsel %vm102, %v30, 0
    %v105 = vand.u32 %v104, 65535
    %v106 = vshrl.u32 %v104, 16
    %v107 = vcvt.s32.f32 %v105
    %v108 = vcvt.s32.f32 %v106
    %109 = vadd.xlane.f32.xlu0 %v107
    %v110 = vpop.xlane.xlu0 %109
    %111 = vadd.xlane.f32.xlu0 %v108
    %v112 = vpop.xlane.xlu0 %111
    %v113 = vcvt.f32.s32 %v110
    %v114 = vcvt.f32.s32 %v112
    %v115 = vshll.u32 %v114, 16
    %v116 = vadd.s32 %v115, %v113
    %vm117 = vcmp.eq.s32.totalorder %v34, 3
    %v118 = vsel %vm117, %v116, %v98
    %119 = vset.pattern.permute.xlu0 4
    %120 = vperm.xlu0 %119, %v39
    %v121 = vpop.permute.xlu0 %120
    %vm122 = vcmp.eq.s32.totalorder %v34, %v121
    %vm123 = vmor %vm103, %vm122
    %v124 = vsel %vm122, %v30, 0
    %v125 = vand.u32 %v124, 65535
    %v126 = vshrl.u32 %v124, 16
    %v127 = vcvt.s32.f32 %v125
    %v128 = vcvt.s32.f32 %v126
    %129 = vadd.xlane.f32.xlu0 %v127
    %v130 = vpop.xlane.xlu0 %129
    %131 = vadd.xlane.f32.xlu0 %v128
    %v132 = vpop.xlane.xlu0 %131
    %v133 = vcvt.f32.s32 %v130
    %v134 = vcvt.f32.s32 %v132
    %v135 = vshll.u32 %v134, 16
    %v136 = vadd.s32 %v135, %v133
    %vm137 = vcmp.eq.s32.totalorder %v34, 4
    %v138 = vsel %vm137, %v136, %v118
    %139 = vset.pattern.permute.xlu0 5
    %140 = vperm.xlu0 %139, %v39
    %v141 = vpop.permute.xlu0 %140
    %vm142 = vcmp.eq.s32.totalorder %v34, %v141
    %vm143 = vmor %vm123, %vm142
    %v144 = vsel %vm142, %v30, 0
    %v145 = vand.u32 %v144, 65535
    %v146 = vshrl.u32 %v144, 16
    %v147 = vcvt.s32.f32 %v145
    %v148 = vcvt.s32.f32 %v146
    %149 = vadd.xlane.f32.xlu0 %v147
    %v150 = vpop.xlane.xlu0 %149
    %151 = vadd.xlane.f32.xlu0 %v148
    %v152 = vpop.xlane.xlu0 %151
    %v153 = vcvt.f32.s32 %v150
    %v154 = vcvt.f32.s32 %v152
    %v155 = vshll.u32 %v154, 16
    %v156 = vadd.s32 %v155, %v153
    %vm157 = vcmp.eq.s32.totalorder %v34, 5
    %v158 = vsel %vm157, %v156, %v138
    %159 = vset.pattern.permute.xlu0 6
    %160 = vperm.xlu0 %159, %v39
    %v161 = vpop.permute.xlu0 %160
    %vm162 = vcmp.eq.s32.totalorder %v34, %v161
    %vm163 = vmor %vm143, %vm162
    %v164 = vsel %vm162, %v30, 0
    %v165 = vand.u32 %v164, 65535
    %v166 = vshrl.u32 %v164, 16
    %v167 = vcvt.s32.f32 %v165
    %v168 = vcvt.s32.f32 %v166
    %169 = vadd.xlane.f32.xlu0 %v167
    %v170 = vpop.xlane.xlu0 %169
    %171 = vadd.xlane.f32.xlu0 %v168
    %v172 = vpop.xlane.xlu0 %171
    %v173 = vcvt.f32.s32 %v170
    %v174 = vcvt.f32.s32 %v172
    %v175 = vshll.u32 %v174, 16
    %v176 = vadd.s32 %v175, %v173
    %vm177 = vcmp.eq.s32.totalorder %v34, 6
    %v178 = vsel %vm177, %v176, %v158
    %179 = vset.pattern.permute.xlu0 7
    %180 = vperm.xlu0 %179, %v39
    %v181 = vpop.permute.xlu0 %180
    %vm182 = vcmp.eq.s32.totalorder %v34, %v181
    %vm183 = vmor %vm163, %vm182
    %v184 = vsel %vm182, %v30, 0
    %v185 = vand.u32 %v184, 65535
    %v186 = vshrl.u32 %v184, 16
    %v187 = vcvt.s32.f32 %v185
    %v188 = vcvt.s32.f32 %v186
    %189 = vadd.xlane.f32.xlu0 %v187
    %v190 = vpop.xlane.xlu0 %189
    %191 = vadd.xlane.f32.xlu0 %v188
    %v192 = vpop.xlane.xlu0 %191
    %v193 = vcvt.f32.s32 %v190
    %v194 = vcvt.f32.s32 %v192
    %v195 = vshll.u32 %v194, 16
    %v196 = vadd.s32 %v195, %v193
    %vm197 = vcmp.eq.s32.totalorder %v34, 7
    %v198 = vsel %vm197, %v196, %v178
    %199 = vset.pattern.permute.xlu0 8
    %200 = vperm.xlu0 %199, %v39
    %v201 = vpop.permute.xlu0 %200
    %vm202 = vcmp.eq.s32.totalorder %v34, %v201
    %vm203 = vmor %vm183, %vm202
    %v204 = vsel %vm202, %v30, 0
    %v205 = vand.u32 %v204, 65535
    %v206 = vshrl.u32 %v204, 16
    %v207 = vcvt.s32.f32 %v205
    %v208 = vcvt.s32.f32 %v206
    %209 = vadd.xlane.f32.xlu0 %v207
    %v210 = vpop.xlane.xlu0 %209
    %211 = vadd.xlane.f32.xlu0 %v208
    %v212 = vpop.xlane.xlu0 %211
    %v213 = vcvt.f32.s32 %v210
    %v214 = vcvt.f32.s32 %v212
    %v215 = vshll.u32 %v214, 16
    %v216 = vadd.s32 %v215, %v213
    %vm217 = vcmp.eq.s32.totalorder %v34, 8
    %v218 = vsel %vm217, %v216, %v198
    %219 = vset.pattern.permute.xlu0 9
    %220 = vperm.xlu0 %219, %v39
    %v221 = vpop.permute.xlu0 %220
    %vm222 = vcmp.eq.s32.totalorder %v34, %v221
    %vm223 = vmor %vm203, %vm222
    %v224 = vsel %vm222, %v30, 0
    %v225 = vand.u32 %v224, 65535
    %v226 = vshrl.u32 %v224, 16
    %v227 = vcvt.s32.f32 %v225
    %v228 = vcvt.s32.f32 %v226
    %229 = vadd.xlane.f32.xlu0 %v227
    %v230 = vpop.xlane.xlu0 %229
    %231 = vadd.xlane.f32.xlu0 %v228
    %v232 = vpop.xlane.xlu0 %231
    %v233 = vcvt.f32.s32 %v230
    %v234 = vcvt.f32.s32 %v232
    %v235 = vshll.u32 %v234, 16
    %v236 = vadd.s32 %v235, %v233
    %vm237 = vcmp.eq.s32.totalorder %v34, 9
    %v238 = vsel %vm237, %v236, %v218
    %239 = vset.pattern.permute.xlu0 10
    %240 = vperm.xlu0 %239, %v39
    %v241 = vpop.permute.xlu0 %240
    %vm242 = vcmp.eq.s32.totalorder %v34, %v241
    %vm243 = vmor %vm223, %vm242
    %v244 = vsel %vm242, %v30, 0
    %v245 = vand.u32 %v244, 65535
    %v246 = vshrl.u32 %v244, 16
    %v247 = vcvt.s32.f32 %v245
    %v248 = vcvt.s32.f32 %v246
    %249 = vadd.xlane.f32.xlu0 %v247
    %v250 = vpop.xlane.xlu0 %249
    %251 = vadd.xlane.f32.xlu0 %v248
    %v252 = vpop.xlane.xlu0 %251
    %v253 = vcvt.f32.s32 %v250
    %v254 = vcvt.f32.s32 %v252
    %v255 = vshll.u32 %v254, 16
    %v256 = vadd.s32 %v255, %v253
    %vm257 = vcmp.eq.s32.totalorder %v34, 10
    %v258 = vsel %vm257, %v256, %v238
    %259 = vset.pattern.permute.xlu0 11
    %260 = vperm.xlu0 %259, %v39
    %v261 = vpop.permute.xlu0 %260
    %vm262 = vcmp.eq.s32.totalorder %v34, %v261
    %vm263 = vmor %vm243, %vm262
    %v264 = vsel %vm262, %v30, 0
    %v265 = vand.u32 %v264, 65535
    %v266 = vshrl.u32 %v264, 16
    %v267 = vcvt.s32.f32 %v265
    %v268 = vcvt.s32.f32 %v266
    %269 = vadd.xlane.f32.xlu0 %v267
    %v270 = vpop.xlane.xlu0 %269
    %271 = vadd.xlane.f32.xlu0 %v268
    %v272 = vpop.xlane.xlu0 %271
    %v273 = vcvt.f32.s32 %v270
    %v274 = vcvt.f32.s32 %v272
    %v275 = vshll.u32 %v274, 16
    %v276 = vadd.s32 %v275, %v273
    %vm277 = vcmp.eq.s32.totalorder %v34, 11
    %v278 = vsel %vm277, %v276, %v258
    %279 = vset.pattern.permute.xlu0 12
    %280 = vperm.xlu0 %279, %v39
    %v281 = vpop.permute.xlu0 %280
    %vm282 = vcmp.eq.s32.totalorder %v34, %v281
    %vm283 = vmor %vm263, %vm282
    %v284 = vsel %vm282, %v30, 0
    %v285 = vand.u32 %v284, 65535
    %v286 = vshrl.u32 %v284, 16
    %v287 = vcvt.s32.f32 %v285
    %v288 = vcvt.s32.f32 %v286
    %289 = vadd.xlane.f32.xlu0 %v287
    %v290 = vpop.xlane.xlu0 %289
    %291 = vadd.xlane.f32.xlu0 %v288
    %v292 = vpop.xlane.xlu0 %291
    %v293 = vcvt.f32.s32 %v290
    %v294 = vcvt.f32.s32 %v292
    %v295 = vshll.u32 %v294, 16
    %v296 = vadd.s32 %v295, %v293
    %vm297 = vcmp.eq.s32.totalorder %v34, 12
    %v298 = vsel %vm297, %v296, %v278
    %299 = vset.pattern.permute.xlu0 13
    %300 = vperm.xlu0 %299, %v39
    %v301 = vpop.permute.xlu0 %300
    %vm302 = vcmp.eq.s32.totalorder %v34, %v301
    %vm303 = vmor %vm283, %vm302
    %v304 = vsel %vm302, %v30, 0
    %v305 = vand.u32 %v304, 65535
    %v306 = vshrl.u32 %v304, 16
    %v307 = vcvt.s32.f32 %v305
    %v308 = vcvt.s32.f32 %v306
    %309 = vadd.xlane.f32.xlu0 %v307
    %v310 = vpop.xlane.xlu0 %309
    %311 = vadd.xlane.f32.xlu0 %v308
    %v312 = vpop.xlane.xlu0 %311
    %v313 = vcvt.f32.s32 %v310
    %v314 = vcvt.f32.s32 %v312
    %v315 = vshll.u32 %v314, 16
    %v316 = vadd.s32 %v315, %v313
    %vm317 = vcmp.eq.s32.totalorder %v34, 13
    %v318 = vsel %vm317, %v316, %v298
    %319 = vset.pattern.permute.xlu0 14
    %320 = vperm.xlu0 %319, %v39
    %v321 = vpop.permute.xlu0 %320
    %vm322 = vcmp.eq.s32.totalorder %v34, %v321
    %vm323 = vmor %vm303, %vm322
    %v324 = vsel %vm322, %v30, 0
    %v325 = vand.u32 %v324, 65535
    %v326 = vshrl.u32 %v324, 16
    %v327 = vcvt.s32.f32 %v325
    %v328 = vcvt.s32.f32 %v326
    %329 = vadd.xlane.f32.xlu0 %v327
    %v330 = vpop.xlane.xlu0 %329
    %331 = vadd.xlane.f32.xlu0 %v328
    %v332 = vpop.xlane.xlu0 %331
    %v333 = vcvt.f32.s32 %v330
    %v334 = vcvt.f32.s32 %v332
    %v335 = vshll.u32 %v334, 16
    %v336 = vadd.s32 %v335, %v333
    %vm337 = vcmp.eq.s32.totalorder %v34, 14
    %v338 = vsel %vm337, %v336, %v318
    %339 = vset.pattern.permute.xlu0 15
    %340 = vperm.xlu0 %339, %v39
    %v341 = vpop.permute.xlu0 %340
    %vm342 = vcmp.eq.s32.totalorder %v34, %v341
    %vm343 = vmor %vm323, %vm342
    %v344 = vsel %vm342, %v30, 0
    %v345 = vand.u32 %v344, 65535
    %v346 = vshrl.u32 %v344, 16
    %v347 = vcvt.s32.f32 %v345
    %v348 = vcvt.s32.f32 %v346
    %349 = vadd.xlane.f32.xlu0 %v347
    %v350 = vpop.xlane.xlu0 %349
    %351 = vadd.xlane.f32.xlu0 %v348
    %v352 = vpop.xlane.xlu0 %351
    %v353 = vcvt.f32.s32 %v350
    %v354 = vcvt.f32.s32 %v352
    %v355 = vshll.u32 %v354, 16
    %v356 = vadd.s32 %v355, %v353
    %vm357 = vcmp.eq.s32.totalorder %v34, 15
    %v358 = vsel %vm357, %v356, %v338
    %359 = vset.pattern.permute.xlu0 16
    %360 = vperm.xlu0 %359, %v39
    %v361 = vpop.permute.xlu0 %360
    %vm362 = vcmp.eq.s32.totalorder %v34, %v361
    %vm363 = vmor %vm343, %vm362
    %v364 = vsel %vm362, %v30, 0
    %v365 = vand.u32 %v364, 65535
    %v366 = vshrl.u32 %v364, 16
    %v367 = vcvt.s32.f32 %v365
    %v368 = vcvt.s32.f32 %v366
    %369 = vadd.xlane.f32.xlu0 %v367
    %v370 = vpop.xlane.xlu0 %369
    %371 = vadd.xlane.f32.xlu0 %v368
    %v372 = vpop.xlane.xlu0 %371
    %v373 = vcvt.f32.s32 %v370
    %v374 = vcvt.f32.s32 %v372
    %v375 = vshll.u32 %v374, 16
    %v376 = vadd.s32 %v375, %v373
    %vm377 = vcmp.eq.s32.totalorder %v34, 16
    %v378 = vsel %vm377, %v376, %v358
    %379 = vset.pattern.permute.xlu0 17
    %380 = vperm.xlu0 %379, %v39
    %v381 = vpop.permute.xlu0 %380
    %vm382 = vcmp.eq.s32.totalorder %v34, %v381
    %vm383 = vmor %vm363, %vm382
    %v384 = vsel %vm382, %v30, 0
    %v385 = vand.u32 %v384, 65535
    %v386 = vshrl.u32 %v384, 16
    %v387 = vcvt.s32.f32 %v385
    %v388 = vcvt.s32.f32 %v386
    %389 = vadd.xlane.f32.xlu0 %v387
    %v390 = vpop.xlane.xlu0 %389
    %391 = vadd.xlane.f32.xlu0 %v388
    %v392 = vpop.xlane.xlu0 %391
    %v393 = vcvt.f32.s32 %v390
    %v394 = vcvt.f32.s32 %v392
    %v395 = vshll.u32 %v394, 16
    %v396 = vadd.s32 %v395, %v393
    %vm397 = vcmp.eq.s32.totalorder %v34, 17
    %v398 = vsel %vm397, %v396, %v378
    %399 = vset.pattern.permute.xlu0 18
    %400 = vperm.xlu0 %399, %v39
    %v401 = vpop.permute.xlu0 %400
    %vm402 = vcmp.eq.s32.totalorder %v34, %v401
    %vm403 = vmor %vm383, %vm402
    %v404 = vsel %vm402, %v30, 0
    %v405 = vand.u32 %v404, 65535
    %v406 = vshrl.u32 %v404, 16
    %v407 = vcvt.s32.f32 %v405
    %v408 = vcvt.s32.f32 %v406
    %409 = vadd.xlane.f32.xlu0 %v407
    %v410 = vpop.xlane.xlu0 %409
    %411 = vadd.xlane.f32.xlu0 %v408
    %v412 = vpop.xlane.xlu0 %411
    %v413 = vcvt.f32.s32 %v410
    %v414 = vcvt.f32.s32 %v412
    %v415 = vshll.u32 %v414, 16
    %v416 = vadd.s32 %v415, %v413
    %vm417 = vcmp.eq.s32.totalorder %v34, 18
    %v418 = vsel %vm417, %v416, %v398
    %419 = vset.pattern.permute.xlu0 19
    %420 = vperm.xlu0 %419, %v39
    %v421 = vpop.permute.xlu0 %420
    %vm422 = vcmp.eq.s32.totalorder %v34, %v421
    %vm423 = vmor %vm403, %vm422
    %v424 = vsel %vm422, %v30, 0
    %v425 = vand.u32 %v424, 65535
    %v426 = vshrl.u32 %v424, 16
    %v427 = vcvt.s32.f32 %v425
    %v428 = vcvt.s32.f32 %v426
    %429 = vadd.xlane.f32.xlu0 %v427
    %v430 = vpop.xlane.xlu0 %429
    %431 = vadd.xlane.f32.xlu0 %v428
    %v432 = vpop.xlane.xlu0 %431
    %v433 = vcvt.f32.s32 %v430
    %v434 = vcvt.f32.s32 %v432
    %v435 = vshll.u32 %v434, 16
    %v436 = vadd.s32 %v435, %v433
    %vm437 = vcmp.eq.s32.totalorder %v34, 19
    %v438 = vsel %vm437, %v436, %v418
    %v439 = vsel %vm423, 50264, %v30
    %440 = vst [vmem:[#allocation5] sm:$0xff] %v439
    %441 = vst [vmem:[#allocation6] sm:$0xff] %v438
    // Predicated region
    $region18: #{tpu_custom_call.1} parent=1 // pred_check
      _
    $region19: #{tpu_custom_call.1} parent=1 // pred_check_branch
      %443 = sbr.rel (0) target = $region21
    $region20: #{tpu_custom_call.1} parent=1 // pred_region
      %s445 = ssub.s32 128, 128
      %446 = vsyncadd [#allocation4], %s445
      %s448 = sshll.u32 [#allocation5], 4
      %s449 = int_to_ptr.vmem [resolvable:$true] %s448
      %451 = dma.vmem_to_hbm [thread:$0]  %s449, 128, %s3, [#allocation4]
    $region21: #{tpu_custom_call.1} parent=1 // pred_fallthru
      _
    // Predicated region
    $region22: #{tpu_custom_call.1} parent=1 // pred_check
      _
    $region23: #{tpu_custom_call.1} parent=1 // pred_check_branch
      %453 = sbr.rel (0) target = $region25
    $region24: #{tpu_custom_call.1} parent=1 // pred_region
      %s455 = ssub.s32 128, 128
      %456 = vsyncadd [#allocation7], %s455
      %s458 = sshll.u32 [#allocation6], 4
      %s459 = int_to_ptr.vmem [resolvable:$true] %s458
      %461 = dma.vmem_to_hbm [thread:$0]  %s459, 128, %s4, [#allocation7]
    $region25: #{tpu_custom_call.1} parent=1 // pred_fallthru
      _
    // Predicated region
    $region26: #{tpu_custom_call.1} parent=1 // pred_check
      _
    $region27: #{tpu_custom_call.1} parent=1 // pred_check_branch
      %463 = sbr.rel (0) target = $region29
    $region28: #{tpu_custom_call.1} parent=1 // pred_region
      %464 = dma.done [#allocation4], 128
    $region29: #{tpu_custom_call.1} parent=1 // pred_fallthru
      _
    // Predicated region
    $region30: #{tpu_custom_call.1} parent=1 // pred_check
      _
    $region31: #{tpu_custom_call.1} parent=1 // pred_check_branch
      %466 = sbr.rel (0) target = $region33
    $region32: #{tpu_custom_call.1} parent=1 // pred_region
      %467 = dma.done [#allocation7], 128
    $region33: #{tpu_custom_call.1} parent=1 // pred_fallthru
      _
    %468 = vsyncpa [#allocation3], 1
    %469 = vsyncpa [#allocation4], 1
    %470 = vsyncpa [#allocation7], 1

</llo_original>
